<compile_context>
chip_gen: v5e
topology: v5e:2x2
jax: 0.10.0
libtpu: 0.0.40
codegen_flags: <defaults>
</compile_context>

<pallas_src>
import functools

import jax
import jax.numpy as jnp
import numpy as np
from jax.experimental import pallas as pl
from jax.experimental.pallas import tpu as pltpu

# ----------------------- model hyper-parameters (opt) -----------------------
INPUT_DIM = 8
EMBED_DIM = 16
HID_DIM = 32
SOURCE_SIZE = 4
MEMORY_SIZE = 4
TARGET_SIZE = 3
OUTPUT_DIM = 4
NEG_SLOPE = 0.01          # nn.LeakyReLU default
LANES = 128               # slab lane width (all feature dims <= 128)


def _leaky(v):
    return jnp.where(v >= 0, v, NEG_SLOPE * v)


def _round_up(x, m):
    return (x + m - 1) // m * m


def _slab_layout(I, E, H, TH):
    """Row offsets of each pre-transposed weight inside the bf16 weight slab.

    Every section starts on a multiple of 16 rows (bf16 sublane tile) so the
    in-kernel static slices are tile-aligned windows.
    """
    r_emb = 0
    r_ih = r_emb + _round_up(I, 16)
    r_hh = r_ih + _round_up(E, 16)
    r_out = r_hh + _round_up(H, 16)
    rows = r_out + _round_up(TH, 16)
    return r_emb, r_ih, r_hh, r_out, rows


# ------------------------------- Pallas kernel ------------------------------
def rnn_kernel(x2_ref, w_ref, b_ref, emb_ref, flt_ref, out_ref, *,
               B, T, I, E, H, O, r_emb, r_ih, r_hh, r_out):
    H3 = 3 * H

    # ---- static slab views (bf16 weights / f32 biases) ----
    w_emb_t = w_ref[r_emb:r_emb + I, 0:E]          # (I, E)     bf16
    w_ih_t = w_ref[r_ih:r_ih + E, 0:H3]            # (E, 3H)    bf16
    w_hh_t = w_ref[r_hh:r_hh + H, 0:H3]            # (H, 3H)    bf16
    w_out_t = w_ref[r_out:r_out + T * H, 0:O]      # (T*H, O)   bf16
    b_emb = b_ref[0:1, 0:E]                        # f32
    b_ih = b_ref[1:2, 0:H3]
    b_hh = b_ref[2:3, 0:H3]
    b_out = b_ref[3:4, 0:O]

    # ---- dense_emb + LeakyReLU (dropout = identity): one (T*B, I) matmul ----
    x2 = x2_ref[...].astype(jnp.bfloat16)
    emb2 = jnp.dot(x2, w_emb_t, preferred_element_type=jnp.float32) + b_emb
    emb2 = _leaky(emb2)                            # (T*B, E) f32, time-major rows
    emb_ref[...] = emb2                            # single store; wrapper reshapes

    # ---- GRU (PyTorch gate order r, z, n) ----
    # Input projection hoisted out of the recurrence, time-major: per-step gate
    # slice below is a contiguous row window (no per-step reshape / gather).
    gi_all = jnp.dot(emb2.astype(jnp.bfloat16), w_ih_t,
                     preferred_element_type=jnp.float32) + b_ih   # (T*B, 3H)
    b_hh_b = jnp.broadcast_to(b_hh, (B, H3))       # broadcast hoisted out of loop

    # TODO(synk): keep W_hh resident in the MXU across all T steps via
    # pltpu.matmul_push_rhs / matmul_acc_lhs / matmul_pop to drop the repeated
    # weight pushes from the serial recurrence chain.
    h = jnp.zeros((B, H), jnp.float32)
    hs = []
    for t in range(T):                             # T small & static -> unrolled
        gi = gi_all[t * B:(t + 1) * B, :]          # contiguous 2-sublane slice
        gh = jnp.dot(h.astype(jnp.bfloat16), w_hh_t,
                     preferred_element_type=jnp.float32) + b_hh_b
        rz = jax.nn.sigmoid(gi[:, 0:2 * H] + gh[:, 0:2 * H])   # fused r,z sigmoid
        r = rz[:, 0:H]
        z = rz[:, H:2 * H]
        n = jnp.tanh(gi[:, 2 * H:H3] + r * gh[:, 2 * H:H3])
        h = (1.0 - z) * n + z * h
        hs.append(_leaky(h))                       # LeakyReLU(hid), register-resident

    # flatten(hid, 1): row-major (t, h) order — one lane-dense (T*H = 256) store.
    flt = jnp.concatenate(hs, axis=1)              # (B, T*H) f32
    flt_ref[...] = flt

    # ---- dense_out + sigmoid (dropout = identity), operand fed from registers ----
    logits = jnp.dot(flt.astype(jnp.bfloat16), w_out_t,
                     preferred_element_type=jnp.float32) + b_out
    out_ref[...] = jax.nn.sigmoid(logits)


# ----------------------- one-time parameter preparation ----------------------
def prepare_params(params):
    """Transpose, bf16-cast and pack all weights/biases into two VMEM slabs."""
    E, I = params["w_emb"].shape
    H3 = params["w_ih"].shape[0]
    H = params["w_hh"].shape[1]
    O, TH = params["w_out"].shape
    assert max(E, H3, O) <= LANES
    r_emb, r_ih, r_hh, r_out, rows = _slab_layout(I, E, H, TH)

    w_slab = np.zeros((rows, LANES), np.float32)
    w_slab[r_emb:r_emb + I, :E] = np.asarray(params["w_emb"]).T
    w_slab[r_ih:r_ih + E, :H3] = np.asarray(params["w_ih"]).T
    w_slab[r_hh:r_hh + H, :H3] = np.asarray(params["w_hh"]).T
    w_slab[r_out:r_out + TH, :O] = np.asarray(params["w_out"]).T

    b_slab = np.zeros((8, LANES), np.float32)
    b_slab[0, :E] = np.asarray(params["b_emb"])
    b_slab[1, :H3] = np.asarray(params["b_ih"])
    b_slab[2, :H3] = np.asarray(params["b_hh"])
    b_slab[3, :O] = np.asarray(params["b_out"])

    return {"w_slab": jnp.asarray(w_slab, jnp.bfloat16),
            "b_slab": jnp.asarray(b_slab, jnp.float32)}


# --------------------------------- wrapper ----------------------------------
@jax.jit
def rnn_forward(past_window, x, prep):
    xc = jnp.concatenate((past_window, x), axis=1)         # (B, T, I) batch_first
    B, T, I = xc.shape
    E, H, O = EMBED_DIM, HID_DIM, OUTPUT_DIM * TARGET_SIZE
    r_emb, r_ih, r_hh, r_out, _ = _slab_layout(I, E, H, T * H)

    # Layout plumbing outside the kernel (free under jit): time-major rows so
    # the per-step GRU gate slice inside the kernel is contiguous.
    x2 = xc.transpose(1, 0, 2).reshape(T * B, I)

    kernel = functools.partial(
        rnn_kernel, B=B, T=T, I=I, E=E, H=H, O=O,
        r_emb=r_emb, r_ih=r_ih, r_hh=r_hh, r_out=r_out)

    vmem = pl.BlockSpec(memory_space=pltpu.MemorySpace.VMEM)
    # TODO(synk): for production batch sizes add a grid over B
    # (dimension_semantics=("parallel",) for megacore / v7x's 2 TCs) with the
    # weight-slab index_map held constant, sizing the B tile against v7x's
    # 64 MiB per-TC VMEM; at B=2 the whole problem is one block.
    emb2, flt, out = pl.pallas_call(
        kernel,
        out_shape=(
            jax.ShapeDtypeStruct((T * B, E), jnp.float32),
            jax.ShapeDtypeStruct((B, T * H), jnp.float32),
            jax.ShapeDtypeStruct((B, O), jnp.float32),
        ),
        in_specs=[vmem, vmem, vmem],
        out_specs=(vmem, vmem, vmem),
    )(x2, prep["w_slab"], prep["b_slab"])

    emb = emb2.reshape(T, B, E).transpose(1, 0, 2)          # back to (B, T, E)
    out = out.reshape(-1, TARGET_SIZE, OUTPUT_DIM)
    return emb, flt, out


# ---------------------------- pure-JAX reference ----------------------------
def rnn_reference(past_window, x, params):
    xc = jnp.concatenate((past_window, x), axis=1)
    emb = _leaky(xc @ params["w_emb"].T + params["b_emb"])
    B, T, _ = emb.shape
    H = params["w_hh"].shape[1]
    h = jnp.zeros((B, H), jnp.float32)
    hs = []
    for t in range(T):
        gi = emb[:, t, :] @ params["w_ih"].T + params["b_ih"]
        gh = h @ params["w_hh"].T + params["b_hh"]
        r = jax.nn.sigmoid(gi[:, 0:H] + gh[:, 0:H])
        z = jax.nn.sigmoid(gi[:, H:2 * H] + gh[:, H:2 * H])
        n = jnp.tanh(gi[:, 2 * H:3 * H] + r * gh[:, 2 * H:3 * H])
        h = (1.0 - z) * n + z * h
        hs.append(h)
    hid = jnp.stack(hs, axis=1)
    flt = _leaky(hid).reshape(B, -1)
    out = jax.nn.sigmoid(flt @ params["w_out"].T + params["b_out"])
    return emb, flt, out.reshape(-1, TARGET_SIZE, OUTPUT_DIM)


# ------------------------------------ main -----------------------------------
if __name__ == "__main__":
    key = jax.random.PRNGKey(0)
    ks = jax.random.split(key, 12)
    T_total = MEMORY_SIZE + SOURCE_SIZE
    OUT_TOTAL = OUTPUT_DIM * TARGET_SIZE

    params = {
        "w_emb": 0.1 * jax.random.normal(ks[0], (EMBED_DIM, INPUT_DIM), jnp.float32),
        "b_emb": 0.1 * jax.random.normal(ks[1], (EMBED_DIM,), jnp.float32),
        "w_ih": 0.1 * jax.random.normal(ks[2], (3 * HID_DIM, EMBED_DIM), jnp.float32),
        "w_hh": 0.1 * jax.random.normal(ks[3], (3 * HID_DIM, HID_DIM), jnp.float32),
        "b_ih": 0.1 * jax.random.normal(ks[4], (3 * HID_DIM,), jnp.float32),
        "b_hh": 0.1 * jax.random.normal(ks[5], (3 * HID_DIM,), jnp.float32),
        "w_out": 0.1 * jax.random.normal(ks[6], (OUT_TOTAL, HID_DIM * T_total), jnp.float32),
        "b_out": 0.1 * jax.random.normal(ks[7], (OUT_TOTAL,), jnp.float32),
    }
    prep = prepare_params(params)   # one-time: transpose + bf16 cast + slab pack

    batch = 2
    past_window = jax.random.normal(ks[8], (batch, MEMORY_SIZE, INPUT_DIM), jnp.float32)
    x = jax.random.normal(ks[9], (batch, SOURCE_SIZE, INPUT_DIM), jnp.float32)

    emb, flt, out = jax.block_until_ready(rnn_forward(past_window, x, prep))
    emb_r, flt_r, out_r = rnn_reference(past_window, x, params)

    assert emb.shape == (batch, T_total, EMBED_DIM)
    assert flt.shape == (batch, T_total * HID_DIM)
    assert out.shape == (batch, TARGET_SIZE, OUTPUT_DIM)
    # bf16 MXU operands with f32 accumulation vs. the f32 reference.
    np.testing.assert_allclose(np.asarray(emb), np.asarray(emb_r), rtol=2e-2, atol=5e-3)
    np.testing.assert_allclose(np.asarray(flt), np.asarray(flt_r), rtol=2e-2, atol=5e-3)
    np.testing.assert_allclose(np.asarray(out), np.asarray(out_r), rtol=2e-2, atol=5e-3)

    print("KERNEL_OK")
</pallas_src>

<mosaic_0001>
module attributes {stable_mosaic.version = 11 : i64} {
  func.func @rnn_kernel(%arg0: memref<16x8xf32, #tpu.memory_space<vmem>>, %arg1: memref<320x128xbf16, #tpu.memory_space<vmem>>, %arg2: memref<8x128xf32, #tpu.memory_space<vmem>>, %arg3: memref<16x16xf32, #tpu.memory_space<vmem>>, %arg4: memref<2x256xf32, #tpu.memory_space<vmem>>, %arg5: memref<2x12xf32, #tpu.memory_space<vmem>>) attributes {dimension_semantics = [], scalar_prefetch = 0 : i64, scratch_operands = 0 : i64, tpu.core_type = #tpu.core_type<tc>} {
    %c0 = arith.constant 0 : index
    %c0_0 = arith.constant 0 : index
    %0 = vector.load %arg1[%c0, %c0_0] : memref<320x128xbf16, #tpu.memory_space<vmem>>, vector<8x16xbf16>
    %c16 = arith.constant 16 : index
    %c0_1 = arith.constant 0 : index
    %1 = vector.load %arg1[%c16, %c0_1] : memref<320x128xbf16, #tpu.memory_space<vmem>>, vector<16x96xbf16>
    %c32 = arith.constant 32 : index
    %c0_2 = arith.constant 0 : index
    %2 = vector.load %arg1[%c32, %c0_2] : memref<320x128xbf16, #tpu.memory_space<vmem>>, vector<32x96xbf16>
    %c64 = arith.constant 64 : index
    %c0_3 = arith.constant 0 : index
    %3 = vector.load %arg1[%c64, %c0_3] : memref<320x128xbf16, #tpu.memory_space<vmem>>, vector<256x12xbf16>
    %c0_4 = arith.constant 0 : index
    %c0_5 = arith.constant 0 : index
    %4 = vector.load %arg2[%c0_4, %c0_5] : memref<8x128xf32, #tpu.memory_space<vmem>>, vector<1x16xf32>
    %c1 = arith.constant 1 : index
    %c0_6 = arith.constant 0 : index
    %5 = vector.load %arg2[%c1, %c0_6] : memref<8x128xf32, #tpu.memory_space<vmem>>, vector<1x96xf32>
    %c2 = arith.constant 2 : index
    %c0_7 = arith.constant 0 : index
    %6 = vector.load %arg2[%c2, %c0_7] : memref<8x128xf32, #tpu.memory_space<vmem>>, vector<1x96xf32>
    %c3 = arith.constant 3 : index
    %c0_8 = arith.constant 0 : index
    %7 = vector.load %arg2[%c3, %c0_8] : memref<8x128xf32, #tpu.memory_space<vmem>>, vector<1x12xf32>
    %c0_9 = arith.constant 0 : index
    %c0_10 = arith.constant 0 : index
    %8 = vector.load %arg0[%c0_9, %c0_10] : memref<16x8xf32, #tpu.memory_space<vmem>>, vector<16x8xf32>
    %9 = arith.truncf %8 : vector<16x8xf32> to vector<16x8xbf16>
    %cst = arith.constant dense<0.000000e+00> : vector<16x16xf32>
    %10 = tpu.matmul %9, %0, %cst {dimension_numbers = #tpu.dot_dimension_numbers<[1], [0], [0], [1], [0, 0, 1, 1], [], []>} : vector<16x8xbf16>, vector<8x16xbf16>, vector<16x16xf32> -> vector<16x16xf32>
    %11 = vector.broadcast %4 : vector<1x16xf32> to vector<16x16xf32>
    %12 = arith.addf %10, %11 : vector<16x16xf32>
    %cst_11 = arith.constant 0.000000e+00 : f32
    %13 = vector.broadcast %cst_11 : f32 to vector<16x16xf32>
    %14 = arith.cmpf oge, %12, %13 : vector<16x16xf32>
    %cst_12 = arith.constant 0.00999999977 : f32
    %15 = vector.broadcast %cst_12 : f32 to vector<16x16xf32>
    %16 = arith.mulf %15, %12 : vector<16x16xf32>
    %17 = arith.select %14, %12, %16 : vector<16x16xi1>, vector<16x16xf32>
    %c0_13 = arith.constant 0 : index
    %c0_14 = arith.constant 0 : index
    %18 = vector.load %arg3[%c0_13, %c0_14] : memref<16x16xf32, #tpu.memory_space<vmem>>, vector<16x16xf32>
    tpu.vector_store %arg3[%c0_13, %c0_14], %17 {strides = array<i32>} : memref<16x16xf32, #tpu.memory_space<vmem>>, vector<16x16xf32>,
    %19 = arith.truncf %17 : vector<16x16xf32> to vector<16x16xbf16>
    %cst_15 = arith.constant dense<0.000000e+00> : vector<16x96xf32>
    %20 = tpu.matmul %19, %1, %cst_15 {dimension_numbers = #tpu.dot_dimension_numbers<[1], [0], [0], [1], [0, 0, 1, 1], [], []>} : vector<16x16xbf16>, vector<16x96xbf16>, vector<16x96xf32> -> vector<16x96xf32>
    %21 = vector.broadcast %5 : vector<1x96xf32> to vector<16x96xf32>
    %22 = arith.addf %20, %21 : vector<16x96xf32>
    %23 = vector.shape_cast %6 : vector<1x96xf32> to vector<1x96xf32>
    %24 = vector.broadcast %23 : vector<1x96xf32> to vector<2x96xf32>
    %cst_16 = arith.constant 0.000000e+00 : f32
    %25 = vector.broadcast %cst_16 : f32 to vector<2x32xf32>
    %26 = vector.extract_strided_slice %22 {offsets = [0, 0], sizes = [2, 96], strides = [1, 1]} : vector<16x96xf32> to vector<2x96xf32>
    %27 = arith.truncf %25 : vector<2x32xf32> to vector<2x32xbf16>
    %cst_17 = arith.constant dense<0.000000e+00> : vector<2x96xf32>
    %28 = tpu.matmul %27, %2, %cst_17 {dimension_numbers = #tpu.dot_dimension_numbers<[1], [0], [0], [1], [0, 0, 1, 1], [], []>} : vector<2x32xbf16>, vector<32x96xbf16>, vector<2x96xf32> -> vector<2x96xf32>
    %29 = arith.addf %28, %24 : vector<2x96xf32>
    %30 = vector.extract_strided_slice %26 {offsets = [0, 0], sizes = [2, 64], strides = [1, 1]} : vector<2x96xf32> to vector<2x64xf32>
    %31 = vector.extract_strided_slice %29 {offsets = [0, 0], sizes = [2, 64], strides = [1, 1]} : vector<2x96xf32> to vector<2x64xf32>
    %32 = arith.addf %30, %31 : vector<2x64xf32>
    %33 = arith.negf %32 : vector<2x64xf32>
    %34 = math.exp %33 : vector<2x64xf32>
    %cst_18 = arith.constant 1.000000e+00 : f32
    %35 = vector.broadcast %cst_18 : f32 to vector<2x64xf32>
    %36 = arith.addf %35, %34 : vector<2x64xf32>
    %37 = arith.divf %35, %36 : vector<2x64xf32>
    %38 = vector.extract_strided_slice %37 {offsets = [0, 0], sizes = [2, 32], strides = [1, 1]} : vector<2x64xf32> to vector<2x32xf32>
    %39 = vector.extract_strided_slice %37 {offsets = [0, 32], sizes = [2, 32], strides = [1, 1]} : vector<2x64xf32> to vector<2x32xf32>
    %40 = vector.extract_strided_slice %26 {offsets = [0, 64], sizes = [2, 32], strides = [1, 1]} : vector<2x96xf32> to vector<2x32xf32>
    %41 = vector.extract_strided_slice %29 {offsets = [0, 64], sizes = [2, 32], strides = [1, 1]} : vector<2x96xf32> to vector<2x32xf32>
    %42 = arith.mulf %38, %41 : vector<2x32xf32>
    %43 = arith.addf %40, %42 : vector<2x32xf32>
    %44 = math.tanh %43 : vector<2x32xf32>
    %cst_19 = arith.constant 1.000000e+00 : f32
    %45 = vector.broadcast %cst_19 : f32 to vector<2x32xf32>
    %46 = arith.subf %45, %39 : vector<2x32xf32>
    %47 = arith.mulf %46, %44 : vector<2x32xf32>
    %48 = arith.mulf %39, %25 : vector<2x32xf32>
    %49 = arith.addf %47, %48 : vector<2x32xf32>
    %cst_20 = arith.constant 0.000000e+00 : f32
    %50 = vector.broadcast %cst_20 : f32 to vector<2x32xf32>
    %51 = arith.cmpf oge, %49, %50 : vector<2x32xf32>
    %cst_21 = arith.constant 0.00999999977 : f32
    %52 = vector.broadcast %cst_21 : f32 to vector<2x32xf32>
    %53 = arith.mulf %52, %49 : vector<2x32xf32>
    %54 = arith.select %51, %49, %53 : vector<2x32xi1>, vector<2x32xf32>
    %55 = vector.extract_strided_slice %22 {offsets = [2, 0], sizes = [2, 96], strides = [1, 1]} : vector<16x96xf32> to vector<2x96xf32>
    %56 = arith.truncf %49 : vector<2x32xf32> to vector<2x32xbf16>
    %cst_22 = arith.constant dense<0.000000e+00> : vector<2x96xf32>
    %57 = tpu.matmul %56, %2, %cst_22 {dimension_numbers = #tpu.dot_dimension_numbers<[1], [0], [0], [1], [0, 0, 1, 1], [], []>} : vector<2x32xbf16>, vector<32x96xbf16>, vector<2x96xf32> -> vector<2x96xf32>
    %58 = arith.addf %57, %24 : vector<2x96xf32>
    %59 = vector.extract_strided_slice %55 {offsets = [0, 0], sizes = [2, 64], strides = [1, 1]} : vector<2x96xf32> to vector<2x64xf32>
    %60 = vector.extract_strided_slice %58 {offsets = [0, 0], sizes = [2, 64], strides = [1, 1]} : vector<2x96xf32> to vector<2x64xf32>
    %61 = arith.addf %59, %60 : vector<2x64xf32>
    %62 = arith.negf %61 : vector<2x64xf32>
    %63 = math.exp %62 : vector<2x64xf32>
    %cst_23 = arith.constant 1.000000e+00 : f32
    %64 = vector.broadcast %cst_23 : f32 to vector<2x64xf32>
    %65 = arith.addf %64, %63 : vector<2x64xf32>
    %66 = arith.divf %64, %65 : vector<2x64xf32>
    %67 = vector.extract_strided_slice %66 {offsets = [0, 0], sizes = [2, 32], strides = [1, 1]} : vector<2x64xf32> to vector<2x32xf32>
    %68 = vector.extract_strided_slice %66 {offsets = [0, 32], sizes = [2, 32], strides = [1, 1]} : vector<2x64xf32> to vector<2x32xf32>
    %69 = vector.extract_strided_slice %55 {offsets = [0, 64], sizes = [2, 32], strides = [1, 1]} : vector<2x96xf32> to vector<2x32xf32>
    %70 = vector.extract_strided_slice %58 {offsets = [0, 64], sizes = [2, 32], strides = [1, 1]} : vector<2x96xf32> to vector<2x32xf32>
    %71 = arith.mulf %67, %70 : vector<2x32xf32>
    %72 = arith.addf %69, %71 : vector<2x32xf32>
    %73 = math.tanh %72 : vector<2x32xf32>
    %cst_24 = arith.constant 1.000000e+00 : f32
    %74 = vector.broadcast %cst_24 : f32 to vector<2x32xf32>
    %75 = arith.subf %74, %68 : vector<2x32xf32>
    %76 = arith.mulf %75, %73 : vector<2x32xf32>
    %77 = arith.mulf %68, %49 : vector<2x32xf32>
    %78 = arith.addf %76, %77 : vector<2x32xf32>
    %cst_25 = arith.constant 0.000000e+00 : f32
    %79 = vector.broadcast %cst_25 : f32 to vector<2x32xf32>
    %80 = arith.cmpf oge, %78, %79 : vector<2x32xf32>
    %cst_26 = arith.constant 0.00999999977 : f32
    %81 = vector.broadcast %cst_26 : f32 to vector<2x32xf32>
    %82 = arith.mulf %81, %78 : vector<2x32xf32>
    %83 = arith.select %80, %78, %82 : vector<2x32xi1>, vector<2x32xf32>
    %84 = vector.extract_strided_slice %22 {offsets = [4, 0], sizes = [2, 96], strides = [1, 1]} : vector<16x96xf32> to vector<2x96xf32>
    %85 = arith.truncf %78 : vector<2x32xf32> to vector<2x32xbf16>
    %cst_27 = arith.constant dense<0.000000e+00> : vector<2x96xf32>
    %86 = tpu.matmul %85, %2, %cst_27 {dimension_numbers = #tpu.dot_dimension_numbers<[1], [0], [0], [1], [0, 0, 1, 1], [], []>} : vector<2x32xbf16>, vector<32x96xbf16>, vector<2x96xf32> -> vector<2x96xf32>
    %87 = arith.addf %86, %24 : vector<2x96xf32>
    %88 = vector.extract_strided_slice %84 {offsets = [0, 0], sizes = [2, 64], strides = [1, 1]} : vector<2x96xf32> to vector<2x64xf32>
    %89 = vector.extract_strided_slice %87 {offsets = [0, 0], sizes = [2, 64], strides = [1, 1]} : vector<2x96xf32> to vector<2x64xf32>
    %90 = arith.addf %88, %89 : vector<2x64xf32>
    %91 = arith.negf %90 : vector<2x64xf32>
    %92 = math.exp %91 : vector<2x64xf32>
    %cst_28 = arith.constant 1.000000e+00 : f32
    %93 = vector.broadcast %cst_28 : f32 to vector<2x64xf32>
    %94 = arith.addf %93, %92 : vector<2x64xf32>
    %95 = arith.divf %93, %94 : vector<2x64xf32>
    %96 = vector.extract_strided_slice %95 {offsets = [0, 0], sizes = [2, 32], strides = [1, 1]} : vector<2x64xf32> to vector<2x32xf32>
    %97 = vector.extract_strided_slice %95 {offsets = [0, 32], sizes = [2, 32], strides = [1, 1]} : vector<2x64xf32> to vector<2x32xf32>
    %98 = vector.extract_strided_slice %84 {offsets = [0, 64], sizes = [2, 32], strides = [1, 1]} : vector<2x96xf32> to vector<2x32xf32>
    %99 = vector.extract_strided_slice %87 {offsets = [0, 64], sizes = [2, 32], strides = [1, 1]} : vector<2x96xf32> to vector<2x32xf32>
    %100 = arith.mulf %96, %99 : vector<2x32xf32>
    %101 = arith.addf %98, %100 : vector<2x32xf32>
    %102 = math.tanh %101 : vector<2x32xf32>
    %cst_29 = arith.constant 1.000000e+00 : f32
    %103 = vector.broadcast %cst_29 : f32 to vector<2x32xf32>
    %104 = arith.subf %103, %97 : vector<2x32xf32>
    %105 = arith.mulf %104, %102 : vector<2x32xf32>
    %106 = arith.mulf %97, %78 : vector<2x32xf32>
    %107 = arith.addf %105, %106 : vector<2x32xf32>
    %cst_30 = arith.constant 0.000000e+00 : f32
    %108 = vector.broadcast %cst_30 : f32 to vector<2x32xf32>
    %109 = arith.cmpf oge, %107, %108 : vector<2x32xf32>
    %cst_31 = arith.constant 0.00999999977 : f32
    %110 = vector.broadcast %cst_31 : f32 to vector<2x32xf32>
    %111 = arith.mulf %110, %107 : vector<2x32xf32>
    %112 = arith.select %109, %107, %111 : vector<2x32xi1>, vector<2x32xf32>
    %113 = vector.extract_strided_slice %22 {offsets = [6, 0], sizes = [2, 96], strides = [1, 1]} : vector<16x96xf32> to vector<2x96xf32>
    %114 = arith.truncf %107 : vector<2x32xf32> to vector<2x32xbf16>
    %cst_32 = arith.constant dense<0.000000e+00> : vector<2x96xf32>
    %115 = tpu.matmul %114, %2, %cst_32 {dimension_numbers = #tpu.dot_dimension_numbers<[1], [0], [0], [1], [0, 0, 1, 1], [], []>} : vector<2x32xbf16>, vector<32x96xbf16>, vector<2x96xf32> -> vector<2x96xf32>
    %116 = arith.addf %115, %24 : vector<2x96xf32>
    %117 = vector.extract_strided_slice %113 {offsets = [0, 0], sizes = [2, 64], strides = [1, 1]} : vector<2x96xf32> to vector<2x64xf32>
    %118 = vector.extract_strided_slice %116 {offsets = [0, 0], sizes = [2, 64], strides = [1, 1]} : vector<2x96xf32> to vector<2x64xf32>
    %119 = arith.addf %117, %118 : vector<2x64xf32>
    %120 = arith.negf %119 : vector<2x64xf32>
    %121 = math.exp %120 : vector<2x64xf32>
    %cst_33 = arith.constant 1.000000e+00 : f32
    %122 = vector.broadcast %cst_33 : f32 to vector<2x64xf32>
    %123 = arith.addf %122, %121 : vector<2x64xf32>
    %124 = arith.divf %122, %123 : vector<2x64xf32>
    %125 = vector.extract_strided_slice %124 {offsets = [0, 0], sizes = [2, 32], strides = [1, 1]} : vector<2x64xf32> to vector<2x32xf32>
    %126 = vector.extract_strided_slice %124 {offsets = [0, 32], sizes = [2, 32], strides = [1, 1]} : vector<2x64xf32> to vector<2x32xf32>
    %127 = vector.extract_strided_slice %113 {offsets = [0, 64], sizes = [2, 32], strides = [1, 1]} : vector<2x96xf32> to vector<2x32xf32>
    %128 = vector.extract_strided_slice %116 {offsets = [0, 64], sizes = [2, 32], strides = [1, 1]} : vector<2x96xf32> to vector<2x32xf32>
    %129 = arith.mulf %125, %128 : vector<2x32xf32>
    %130 = arith.addf %127, %129 : vector<2x32xf32>
    %131 = math.tanh %130 : vector<2x32xf32>
    %cst_34 = arith.constant 1.000000e+00 : f32
    %132 = vector.broadcast %cst_34 : f32 to vector<2x32xf32>
    %133 = arith.subf %132, %126 : vector<2x32xf32>
    %134 = arith.mulf %133, %131 : vector<2x32xf32>
    %135 = arith.mulf %126, %107 : vector<2x32xf32>
    %136 = arith.addf %134, %135 : vector<2x32xf32>
    %cst_35 = arith.constant 0.000000e+00 : f32
    %137 = vector.broadcast %cst_35 : f32 to vector<2x32xf32>
    %138 = arith.cmpf oge, %136, %137 : vector<2x32xf32>
    %cst_36 = arith.constant 0.00999999977 : f32
    %139 = vector.broadcast %cst_36 : f32 to vector<2x32xf32>
    %140 = arith.mulf %139, %136 : vector<2x32xf32>
    %141 = arith.select %138, %136, %140 : vector<2x32xi1>, vector<2x32xf32>
    %142 = vector.extract_strided_slice %22 {offsets = [8, 0], sizes = [2, 96], strides = [1, 1]} : vector<16x96xf32> to vector<2x96xf32>
    %143 = arith.truncf %136 : vector<2x32xf32> to vector<2x32xbf16>
    %cst_37 = arith.constant dense<0.000000e+00> : vector<2x96xf32>
    %144 = tpu.matmul %143, %2, %cst_37 {dimension_numbers = #tpu.dot_dimension_numbers<[1], [0], [0], [1], [0, 0, 1, 1], [], []>} : vector<2x32xbf16>, vector<32x96xbf16>, vector<2x96xf32> -> vector<2x96xf32>
    %145 = arith.addf %144, %24 : vector<2x96xf32>
    %146 = vector.extract_strided_slice %142 {offsets = [0, 0], sizes = [2, 64], strides = [1, 1]} : vector<2x96xf32> to vector<2x64xf32>
    %147 = vector.extract_strided_slice %145 {offsets = [0, 0], sizes = [2, 64], strides = [1, 1]} : vector<2x96xf32> to vector<2x64xf32>
    %148 = arith.addf %146, %147 : vector<2x64xf32>
    %149 = arith.negf %148 : vector<2x64xf32>
    %150 = math.exp %149 : vector<2x64xf32>
    %cst_38 = arith.constant 1.000000e+00 : f32
    %151 = vector.broadcast %cst_38 : f32 to vector<2x64xf32>
    %152 = arith.addf %151, %150 : vector<2x64xf32>
    %153 = arith.divf %151, %152 : vector<2x64xf32>
    %154 = vector.extract_strided_slice %153 {offsets = [0, 0], sizes = [2, 32], strides = [1, 1]} : vector<2x64xf32> to vector<2x32xf32>
    %155 = vector.extract_strided_slice %153 {offsets = [0, 32], sizes = [2, 32], strides = [1, 1]} : vector<2x64xf32> to vector<2x32xf32>
    %156 = vector.extract_strided_slice %142 {offsets = [0, 64], sizes = [2, 32], strides = [1, 1]} : vector<2x96xf32> to vector<2x32xf32>
    %157 = vector.extract_strided_slice %145 {offsets = [0, 64], sizes = [2, 32], strides = [1, 1]} : vector<2x96xf32> to vector<2x32xf32>
    %158 = arith.mulf %154, %157 : vector<2x32xf32>
    %159 = arith.addf %156, %158 : vector<2x32xf32>
    %160 = math.tanh %159 : vector<2x32xf32>
    %cst_39 = arith.constant 1.000000e+00 : f32
    %161 = vector.broadcast %cst_39 : f32 to vector<2x32xf32>
    %162 = arith.subf %161, %155 : vector<2x32xf32>
    %163 = arith.mulf %162, %160 : vector<2x32xf32>
    %164 = arith.mulf %155, %136 : vector<2x32xf32>
    %165 = arith.addf %163, %164 : vector<2x32xf32>
    %cst_40 = arith.constant 0.000000e+00 : f32
    %166 = vector.broadcast %cst_40 : f32 to vector<2x32xf32>
    %167 = arith.cmpf oge, %165, %166 : vector<2x32xf32>
    %cst_41 = arith.constant 0.00999999977 : f32
    %168 = vector.broadcast %cst_41 : f32 to vector<2x32xf32>
    %169 = arith.mulf %168, %165 : vector<2x32xf32>
    %170 = arith.select %167, %165, %169 : vector<2x32xi1>, vector<2x32xf32>
    %171 = vector.extract_strided_slice %22 {offsets = [10, 0], sizes = [2, 96], strides = [1, 1]} : vector<16x96xf32> to vector<2x96xf32>
    %172 = arith.truncf %165 : vector<2x32xf32> to vector<2x32xbf16>
    %cst_42 = arith.constant dense<0.000000e+00> : vector<2x96xf32>
    %173 = tpu.matmul %172, %2, %cst_42 {dimension_numbers = #tpu.dot_dimension_numbers<[1], [0], [0], [1], [0, 0, 1, 1], [], []>} : vector<2x32xbf16>, vector<32x96xbf16>, vector<2x96xf32> -> vector<2x96xf32>
    %174 = arith.addf %173, %24 : vector<2x96xf32>
    %175 = vector.extract_strided_slice %171 {offsets = [0, 0], sizes = [2, 64], strides = [1, 1]} : vector<2x96xf32> to vector<2x64xf32>
    %176 = vector.extract_strided_slice %174 {offsets = [0, 0], sizes = [2, 64], strides = [1, 1]} : vector<2x96xf32> to vector<2x64xf32>
    %177 = arith.addf %175, %176 : vector<2x64xf32>
    %178 = arith.negf %177 : vector<2x64xf32>
    %179 = math.exp %178 : vector<2x64xf32>
    %cst_43 = arith.constant 1.000000e+00 : f32
    %180 = vector.broadcast %cst_43 : f32 to vector<2x64xf32>
    %181 = arith.addf %180, %179 : vector<2x64xf32>
    %182 = arith.divf %180, %181 : vector<2x64xf32>
    %183 = vector.extract_strided_slice %182 {offsets = [0, 0], sizes = [2, 32], strides = [1, 1]} : vector<2x64xf32> to vector<2x32xf32>
    %184 = vector.extract_strided_slice %182 {offsets = [0, 32], sizes = [2, 32], strides = [1, 1]} : vector<2x64xf32> to vector<2x32xf32>
    %185 = vector.extract_strided_slice %171 {offsets = [0, 64], sizes = [2, 32], strides = [1, 1]} : vector<2x96xf32> to vector<2x32xf32>
    %186 = vector.extract_strided_slice %174 {offsets = [0, 64], sizes = [2, 32], strides = [1, 1]} : vector<2x96xf32> to vector<2x32xf32>
    %187 = arith.mulf %183, %186 : vector<2x32xf32>
    %188 = arith.addf %185, %187 : vector<2x32xf32>
    %189 = math.tanh %188 : vector<2x32xf32>
    %cst_44 = arith.constant 1.000000e+00 : f32
    %190 = vector.broadcast %cst_44 : f32 to vector<2x32xf32>
    %191 = arith.subf %190, %184 : vector<2x32xf32>
    %192 = arith.mulf %191, %189 : vector<2x32xf32>
    %193 = arith.mulf %184, %165 : vector<2x32xf32>
    %194 = arith.addf %192, %193 : vector<2x32xf32>
    %cst_45 = arith.constant 0.000000e+00 : f32
    %195 = vector.broadcast %cst_45 : f32 to vector<2x32xf32>
    %196 = arith.cmpf oge, %194, %195 : vector<2x32xf32>
    %cst_46 = arith.constant 0.00999999977 : f32
    %197 = vector.broadcast %cst_46 : f32 to vector<2x32xf32>
    %198 = arith.mulf %197, %194 : vector<2x32xf32>
    %199 = arith.select %196, %194, %198 : vector<2x32xi1>, vector<2x32xf32>
    %200 = vector.extract_strided_slice %22 {offsets = [12, 0], sizes = [2, 96], strides = [1, 1]} : vector<16x96xf32> to vector<2x96xf32>
    %201 = arith.truncf %194 : vector<2x32xf32> to vector<2x32xbf16>
    %cst_47 = arith.constant dense<0.000000e+00> : vector<2x96xf32>
    %202 = tpu.matmul %201, %2, %cst_47 {dimension_numbers = #tpu.dot_dimension_numbers<[1], [0], [0], [1], [0, 0, 1, 1], [], []>} : vector<2x32xbf16>, vector<32x96xbf16>, vector<2x96xf32> -> vector<2x96xf32>
    %203 = arith.addf %202, %24 : vector<2x96xf32>
    %204 = vector.extract_strided_slice %200 {offsets = [0, 0], sizes = [2, 64], strides = [1, 1]} : vector<2x96xf32> to vector<2x64xf32>
    %205 = vector.extract_strided_slice %203 {offsets = [0, 0], sizes = [2, 64], strides = [1, 1]} : vector<2x96xf32> to vector<2x64xf32>
    %206 = arith.addf %204, %205 : vector<2x64xf32>
    %207 = arith.negf %206 : vector<2x64xf32>
    %208 = math.exp %207 : vector<2x64xf32>
    %cst_48 = arith.constant 1.000000e+00 : f32
    %209 = vector.broadcast %cst_48 : f32 to vector<2x64xf32>
    %210 = arith.addf %209, %208 : vector<2x64xf32>
    %211 = arith.divf %209, %210 : vector<2x64xf32>
    %212 = vector.extract_strided_slice %211 {offsets = [0, 0], sizes = [2, 32], strides = [1, 1]} : vector<2x64xf32> to vector<2x32xf32>
    %213 = vector.extract_strided_slice %211 {offsets = [0, 32], sizes = [2, 32], strides = [1, 1]} : vector<2x64xf32> to vector<2x32xf32>
    %214 = vector.extract_strided_slice %200 {offsets = [0, 64], sizes = [2, 32], strides = [1, 1]} : vector<2x96xf32> to vector<2x32xf32>
    %215 = vector.extract_strided_slice %203 {offsets = [0, 64], sizes = [2, 32], strides = [1, 1]} : vector<2x96xf32> to vector<2x32xf32>
    %216 = arith.mulf %212, %215 : vector<2x32xf32>
    %217 = arith.addf %214, %216 : vector<2x32xf32>
    %218 = math.tanh %217 : vector<2x32xf32>
    %cst_49 = arith.constant 1.000000e+00 : f32
    %219 = vector.broadcast %cst_49 : f32 to vector<2x32xf32>
    %220 = arith.subf %219, %213 : vector<2x32xf32>
    %221 = arith.mulf %220, %218 : vector<2x32xf32>
    %222 = arith.mulf %213, %194 : vector<2x32xf32>
    %223 = arith.addf %221, %222 : vector<2x32xf32>
    %cst_50 = arith.constant 0.000000e+00 : f32
    %224 = vector.broadcast %cst_50 : f32 to vector<2x32xf32>
    %225 = arith.cmpf oge, %223, %224 : vector<2x32xf32>
    %cst_51 = arith.constant 0.00999999977 : f32
    %226 = vector.broadcast %cst_51 : f32 to vector<2x32xf32>
    %227 = arith.mulf %226, %223 : vector<2x32xf32>
    %228 = arith.select %225, %223, %227 : vector<2x32xi1>, vector<2x32xf32>
    %229 = vector.extract_strided_slice %22 {offsets = [14, 0], sizes = [2, 96], strides = [1, 1]} : vector<16x96xf32> to vector<2x96xf32>
    %230 = arith.truncf %223 : vector<2x32xf32> to vector<2x32xbf16>
    %cst_52 = arith.constant dense<0.000000e+00> : vector<2x96xf32>
    %231 = tpu.matmul %230, %2, %cst_52 {dimension_numbers = #tpu.dot_dimension_numbers<[1], [0], [0], [1], [0, 0, 1, 1], [], []>} : vector<2x32xbf16>, vector<32x96xbf16>, vector<2x96xf32> -> vector<2x96xf32>
    %232 = arith.addf %231, %24 : vector<2x96xf32>
    %233 = vector.extract_strided_slice %229 {offsets = [0, 0], sizes = [2, 64], strides = [1, 1]} : vector<2x96xf32> to vector<2x64xf32>
    %234 = vector.extract_strided_slice %232 {offsets = [0, 0], sizes = [2, 64], strides = [1, 1]} : vector<2x96xf32> to vector<2x64xf32>
    %235 = arith.addf %233, %234 : vector<2x64xf32>
    %236 = arith.negf %235 : vector<2x64xf32>
    %237 = math.exp %236 : vector<2x64xf32>
    %cst_53 = arith.constant 1.000000e+00 : f32
    %238 = vector.broadcast %cst_53 : f32 to vector<2x64xf32>
    %239 = arith.addf %238, %237 : vector<2x64xf32>
    %240 = arith.divf %238, %239 : vector<2x64xf32>
    %241 = vector.extract_strided_slice %240 {offsets = [0, 0], sizes = [2, 32], strides = [1, 1]} : vector<2x64xf32> to vector<2x32xf32>
    %242 = vector.extract_strided_slice %240 {offsets = [0, 32], sizes = [2, 32], strides = [1, 1]} : vector<2x64xf32> to vector<2x32xf32>
    %243 = vector.extract_strided_slice %229 {offsets = [0, 64], sizes = [2, 32], strides = [1, 1]} : vector<2x96xf32> to vector<2x32xf32>
    %244 = vector.extract_strided_slice %232 {offsets = [0, 64], sizes = [2, 32], strides = [1, 1]} : vector<2x96xf32> to vector<2x32xf32>
    %245 = arith.mulf %241, %244 : vector<2x32xf32>
    %246 = arith.addf %243, %245 : vector<2x32xf32>
    %247 = math.tanh %246 : vector<2x32xf32>
    %cst_54 = arith.constant 1.000000e+00 : f32
    %248 = vector.broadcast %cst_54 : f32 to vector<2x32xf32>
    %249 = arith.subf %248, %242 : vector<2x32xf32>
    %250 = arith.mulf %249, %247 : vector<2x32xf32>
    %251 = arith.mulf %242, %223 : vector<2x32xf32>
    %252 = arith.addf %250, %251 : vector<2x32xf32>
    %cst_55 = arith.constant 0.000000e+00 : f32
    %253 = vector.broadcast %cst_55 : f32 to vector<2x32xf32>
    %254 = arith.cmpf oge, %252, %253 : vector<2x32xf32>
    %cst_56 = arith.constant 0.00999999977 : f32
    %255 = vector.broadcast %cst_56 : f32 to vector<2x32xf32>
    %256 = arith.mulf %255, %252 : vector<2x32xf32>
    %257 = arith.select %254, %252, %256 : vector<2x32xi1>, vector<2x32xf32>
    %258 = tpu.concatenate %54, %83, %112, %141, %170, %199, %228, %257 in 1 : vector<2x32xf32>, vector<2x32xf32>, vector<2x32xf32>, vector<2x32xf32>, vector<2x32xf32>, vector<2x32xf32>, vector<2x32xf32>, vector<2x32xf32> -> vector<2x256xf32>
    %c0_57 = arith.constant 0 : index
    %c0_58 = arith.constant 0 : index
    %259 = vector.load %arg4[%c0_57, %c0_58] : memref<2x256xf32, #tpu.memory_space<vmem>>, vector<2x256xf32>
    tpu.vector_store %arg4[%c0_57, %c0_58], %258 {strides = array<i32>} : memref<2x256xf32, #tpu.memory_space<vmem>>, vector<2x256xf32>,
    %260 = arith.truncf %258 : vector<2x256xf32> to vector<2x256xbf16>
    %cst_59 = arith.constant dense<0.000000e+00> : vector<2x12xf32>
    %261 = tpu.matmul %260, %3, %cst_59 {dimension_numbers = #tpu.dot_dimension_numbers<[1], [0], [0], [1], [0, 0, 1, 1], [], []>} : vector<2x256xbf16>, vector<256x12xbf16>, vector<2x12xf32> -> vector<2x12xf32>
    %262 = vector.broadcast %7 : vector<1x12xf32> to vector<2x12xf32>
    %263 = arith.addf %261, %262 : vector<2x12xf32>
    %264 = arith.negf %263 : vector<2x12xf32>
    %265 = math.exp %264 : vector<2x12xf32>
    %cst_60 = arith.constant 1.000000e+00 : f32
    %266 = vector.broadcast %cst_60 : f32 to vector<2x12xf32>
    %267 = arith.addf %266, %265 : vector<2x12xf32>
    %268 = arith.divf %266, %267 : vector<2x12xf32>
    %c0_61 = arith.constant 0 : index
    %c0_62 = arith.constant 0 : index
    %269 = vector.load %arg5[%c0_61, %c0_62] : memref<2x12xf32, #tpu.memory_space<vmem>>, vector<2x12xf32>
    tpu.vector_store %arg5[%c0_61, %c0_62], %268 {strides = array<i32>} : memref<2x12xf32, #tpu.memory_space<vmem>>, vector<2x12xf32>,
    return
  }
}

</mosaic_0001>

<llo_original>
// kernel: rnn_forward.1
$region0: #{rnn_forward.1}
  #allocation0 [shape = 'u32[]', space=smem, size = 0x4, offset = 0x4, fixed_abs, tag = 'smem constant byte address 0x4 - core index']
  #allocation1 [shape = 'u32[72,128]{1,0:T(1,128)}', space=vmem, size = 0x9000, scoped, tag = 'internal scratch']
  %s0 = inlined_call_operand.vmem [shape: f32[16,8], index: 0, kind: input, shape index: {}]
  %s1 = inlined_call_operand.hbm [shape: bf16[320,128], index: 1, kind: input, shape index: {}]
  %s2 = inlined_call_operand.vmem [shape: f32[8,128], index: 2, kind: input, shape index: {}]
  %s3 = inlined_call_operand.vmem [shape: f32[16,16], index: 3, kind: output, shape index: {0}]
  %s4 = inlined_call_operand.hbm [shape: f32[2,256], index: 4, kind: output, shape index: {1}]
  %s5 = inlined_call_operand.vmem [shape: f32[2,12], index: 5, kind: output, shape index: {2}]
  %6 = xla_tuple %s3, %s4, %s5
  %s7 = sld [smem:[#allocation0]]
  $region42: #{rnn_forward.1} parent=0
    _
  %s9 = ssub.s32 1, %s7
  %s10 = scalar_select 0, %s9, %s7
  $region1: #{rnn_forward.1} parent=0
    #allocation2 [shape = 'u8[81920]{0}', space=vmem, size = 0x14000, scoped, tag = 'input window, operand 1, single buffered']
    #allocation3 [shape = 's32[1]{0}', space=sflag, size = 0x4, scoped, tag = 'scoped memory for rnn_forward.1']
    #allocation4 [shape = 's32[1]{0}', space=sflag, size = 0x4, scoped, tag = 'scoped memory for rnn_forward.1']
    #allocation5 [shape = 'u8[2048]{0}', space=vmem, size = 0x800, scoped, tag = 'output window, operand 1, single buffered']
    %11 = vsyncpa [#allocation3], 0
    %12 = vsyncpa [#allocation4], 0
    // Predicated region
    $region2: #{rnn_forward.1} parent=1 // pred_check
      _
    $region3: #{rnn_forward.1} parent=1 // pred_check_branch
      %14 = sbr.rel (0) target = $region5
    $region4: #{rnn_forward.1} parent=1 // pred_region
      _
    $region5: #{rnn_forward.1} parent=1 // pred_fallthru
      _
    // Predicated region
    $region6: #{rnn_forward.1} parent=1 // pred_check
      _
    $region7: #{rnn_forward.1} parent=1 // pred_check_branch
      %16 = sbr.rel (0) target = $region9
    $region8: #{rnn_forward.1} parent=1 // pred_region
      %18 = vsyncadd [#allocation3], 0
      %s19 = sshll.u32 %s1, 4
      %s20 = int_to_ptr.hbm [resolvable:$true] %s19
      %s21 = sshll.u32 [#allocation2], 4
      %s22 = int_to_ptr.vmem [resolvable:$true] %s21
      %27 = dma.hbm_to_vmem [thread:$0]  %s20, 2560, %s22, [#allocation3], 64, 64, 4
    $region9: #{rnn_forward.1} parent=1 // pred_fallthru
      _
    // Predicated region
    $region10: #{rnn_forward.1} parent=1 // pred_check
      _
    $region11: #{rnn_forward.1} parent=1 // pred_check_branch
      %29 = sbr.rel (0) target = $region13
    $region12: #{rnn_forward.1} parent=1 // pred_region
      _
    $region13: #{rnn_forward.1} parent=1 // pred_fallthru
      _
    // Predicated region
    $region14: #{rnn_forward.1} parent=1 // pred_check
      _
    $region15: #{rnn_forward.1} parent=1 // pred_check_branch
      %31 = sbr.rel (0) target = $region17
    $region16: #{rnn_forward.1} parent=1 // pred_region
      %33 = dma.done [#allocation3], 2560
    $region17: #{rnn_forward.1} parent=1 // pred_fallthru
      _
    %v35 = vld [vmem:[#allocation2] sm:$0xf]
    %v36 = vld [vmem:[#allocation2 + $0x8] sm:$0xf]
    %v37 = vld [vmem:[#allocation2 + $0xc] sm:$0xf]
    %v38 = vld [vmem:[#allocation2 + $0x10] sm:$0xf]
    %v39 = vld [vmem:[#allocation2 + $0x14] sm:$0xf]
    %v40 = vld [vmem:[#allocation2 + $0x18] sm:$0xf]
    %v41 = vld [vmem:[#allocation2 + $0x1c] sm:$0xf]
    %v42 = vld [vmem:[#allocation2 + $0x20] sm:$0xf]
    %v43 = vld [vmem:[#allocation2 + $0x24] sm:$0xf]
    %v44 = vld [vmem:[#allocation2 + $0x28] sm:$0xf]
    %v45 = vld [vmem:[#allocation2 + $0x2c] sm:$0xf]
    %v46 = vld [vmem:[#allocation2 + $0x30] sm:$0xf]
    %v47 = vld [vmem:[#allocation2 + $0x34] sm:$0xf]
    %v48 = vld [vmem:[#allocation2 + $0x38] sm:$0xf]
    %v49 = vld [vmem:[#allocation2 + $0x3c] sm:$0xf]
    %v50 = vld [vmem:[#allocation2 + $0x40] sm:$0xf]
    %v51 = vld [vmem:[#allocation2 + $0x44] sm:$0xf]
    %v52 = vld [vmem:[#allocation2 + $0x48] sm:$0xf]
    %v53 = vld [vmem:[#allocation2 + $0x4c] sm:$0xf]
    %v54 = vld [vmem:[#allocation2 + $0x50] sm:$0xf]
    %v55 = vld [vmem:[#allocation2 + $0x54] sm:$0xf]
    %v56 = vld [vmem:[#allocation2 + $0x58] sm:$0xf]
    %v57 = vld [vmem:[#allocation2 + $0x5c] sm:$0xf]
    %v58 = vld [vmem:[#allocation2 + $0x60] sm:$0xf]
    %v59 = vld [vmem:[#allocation2 + $0x64] sm:$0xf]
    %v60 = vld [vmem:[#allocation2 + $0x68] sm:$0xf]
    %v61 = vld [vmem:[#allocation2 + $0x6c] sm:$0xf]
    %v62 = vld [vmem:[#allocation2 + $0x70] sm:$0xf]
    %v63 = vld [vmem:[#allocation2 + $0x74] sm:$0xf]
    %v64 = vld [vmem:[#allocation2 + $0x78] sm:$0xf]
    %v65 = vld [vmem:[#allocation2 + $0x7c] sm:$0xf]
    %v66 = vld [vmem:[#allocation2 + $0x80] sm:$0xf]
    %v67 = vld [vmem:[#allocation2 + $0x84] sm:$0xf]
    %v68 = vld [vmem:[#allocation2 + $0x88] sm:$0xf]
    %v69 = vld [vmem:[#allocation2 + $0x8c] sm:$0xf]
    %v70 = vld [vmem:[#allocation2 + $0x90] sm:$0xf]
    %v71 = vld [vmem:[#allocation2 + $0x94] sm:$0xf]
    %v72 = vld [vmem:[#allocation2 + $0x98] sm:$0xf]
    %v73 = vld [vmem:[#allocation2 + $0x9c] sm:$0xf]
    %v74 = vld [vmem:[%s2] sm:$0x1]
    %v75 = vld [vmem:[%s2 + $0x1] sm:$0x1]
    %v76 = vld [vmem:[%s2 + $0x2] sm:$0x1]
    %v77 = vld [vmem:[%s2 + $0x3] sm:$0x1]
    %v78 = vld [vmem:[%s0] sm:$0xff]
    %v79 = vld [vmem:[%s0 + $0x8] sm:$0xff]
    %v80 = vpack.c.bf16 %v79, %v78
    %v81 = vperm.slane %v74, 0
    %vm82 = vcmask 64512
    %v84 = vsel %vm82, %v80, 0
    %vm86 = vcmask 1043456
    %v88 = vsel %vm86, %v35, 0
    %90 = vmatpush.bf16.msra.mxu0 0
    %91 = vmatpush.bf16.msra.mxu0 0
    %92 = vmatpush.bf16.msra.mxu0 0
    %93 = vmatpush.bf16.msra.mxu0 0
    %94 = vmatpush.bf16.msra.mxu0 0
    %95 = vmatpush.bf16.msra.mxu0 0
    %96 = vmatpush.bf16.msra.mxu0 0
    %97 = vmatpush.bf16.msra.mxu0 %v88
    %98 = vmatmul.bf16.gmra.mxu0 %v84
    %v99 = vpop.f32.mrf.mxu0
    %v100 = vadd.f32 %v81, %v99
    %v101 = vpop.f32.mrf.mxu0
    %v102 = vadd.f32 %v81, %v101
    %103 = vdwg.mxu0
    %vm104 = vcmp.ge.f32.partialorder %v100, 0.0
    %vm105 = vcmp.ge.f32.partialorder %v102, 0.0
    %v106 = vmul.f32 %v100, 0.01
    %v107 = vmul.f32 %v102, 0.01
    %v108 = vsel %vm104, %v100, %v106
    %v109 = vsel %vm105, %v102, %v107
    %vm110 = vcmask 130048
    %111 = vst.msk [vmem:[%s3] sm:$0xff] %vm110, %v108
    %112 = vst.msk [vmem:[%s3 + $0x8] sm:$0xff] %vm110, %v109
    %v113 = vpack.c.bf16 %v109, %v108
    %v114 = vperm.slane %v75, 0
    %v117 = vunpack.c.l.b16 %v36
    %v118 = vunpack.c.l.b16 %v37
    %v119 = vpack.c.b16 %v118, %v117
    %v122 = vsel %vm110, %v113, 0
    %124 = vmatpush.bf16.msra.mxu0 0
    %125 = vmatpush.bf16.msra.mxu0 0
    %126 = vmatpush.bf16.msra.mxu0 0
    %127 = vmatpush.bf16.msra.mxu0 0
    %128 = vmatpush.bf16.msra.mxu0 0
    %129 = vmatpush.bf16.msra.mxu0 0
    %130 = vmatpush.bf16.msra.mxu0 0
    %131 = vmatpush.bf16.msra.mxu0 %v119
    %132 = vmatmul.bf16.gmra.mxu0 %v122
    %v133 = vpop.f32.mrf.mxu0
    %v134 = vadd.f32 %v114, %v133
    %v135 = vpop.f32.mrf.mxu0
    %v136 = vadd.f32 %v114, %v135
    %137 = vdwg.mxu0
    %v138 = vperm.slane %v76, 0
    %v143 = vunpack.c.l.b16 %v38
    %v144 = vunpack.c.l.b16 %v39
    %v145 = vunpack.c.l.b16 %v40
    %v146 = vunpack.c.l.b16 %v41
    %v147 = vpack.c.b16 %v144, %v143
    %v148 = vpack.c.b16 %v146, %v145
    %vm151 = vcmask 261120
    %v153 = vsel %vm151, 0, 0
    %155 = vmatpush.bf16.msra.mxu0 0
    %156 = vmatpush.bf16.msra.mxu0 0
    %157 = vmatpush.bf16.msra.mxu0 0
    %158 = vmatpush.bf16.msra.mxu0 0
    %159 = vmatpush.bf16.msra.mxu0 0
    %160 = vmatpush.bf16.msra.mxu0 0
    %161 = vmatpush.bf16.msra.mxu0 %v148
    %162 = vmatpush.bf16.msra.mxu0 %v147
    %163 = vmatmul.bf16.gmra.mxu0 %v153
    %v164 = vpop.f32.mrf.mxu0
    %v165 = vadd.f32 %v138, %v164
    %v166 = vpop.f32.mrf.mxu0
    %167 = vdwg.mxu0
    %v168 = vadd.f32 %v134, %v165
    %v169 = vxor.u32 %v168, 2147483648
    %v170 = vmul.f32 %v169, 1.442695
    %v171 = vpow.pop %v170
    %v172 = vadd.f32 %v171, 1.0
    %v173 = vrcp.pop %v172
    %v174 = vmul.f32 %v172, %v173
    %v175 = vsub.f32 1.0, %v174
    %v176 = vmul.f32 %v173, %v175
    %v177 = vadd.f32 %v173, %v176
    %vm178 = vweird.f32 %v172
    %vm179 = vweird.f32 %v173
    %vm180 = vmor %vm178, %vm179
    %v181 = vsel %vm180, %v173, %v177
    %v182 = vand.u32 2147483647, %v172
    %vm183 = vcmp.eq.f32.partialorder %v182, 8.507059e+37
    %v184 = vand.u32 %v172, 2147483648
    %v185 = vor.u32 1.1754944e-38, %v184
    %v186 = vsel %vm183, %v185, %v181
    %v187 = vmul.f32 1.0, %v186
    %189 = vrot.lane.b32.xlu0 %v165, 64
    %v190 = vpop.permute.xlu0 %189
    %v192 = vmul.f32 %v187, %v190
    %194 = vrot.lane.b32.xlu0 %v192, 64
    %v195 = vpop.permute.xlu0 %194
    %v197 = vadd.f32 %v134, %v195
    %v198 = vtanh.pop %v197
    %v199 = vsub.f32 1.0, %v187
    %201 = vrot.lane.b32.xlu0 %v198, 96
    %v202 = vpop.permute.xlu0 %201
    %v204 = vmul.f32 %v199, %v202
    %v205 = vmul.f32 %v187, 0.0
    %v206 = vadd.f32 %v204, %v205
    %vm207 = vcmp.ge.f32.partialorder %v206, 0.0
    %v208 = vmul.f32 %v206, 0.01
    %v209 = vsel %vm207, %v206, %v208
    %v210 = vpack.c.bf16 %v206, %v206
    %212 = vrot.lane.b32.xlu0 %v210, 96
    %v213 = vpop.permute.xlu0 %212
    %v215 = vsel %vm151, %v213, 0
    %217 = vmatpush.bf16.msra.mxu0 0
    %218 = vmatpush.bf16.msra.mxu0 0
    %219 = vmatpush.bf16.msra.mxu0 0
    %220 = vmatpush.bf16.msra.mxu0 0
    %221 = vmatpush.bf16.msra.mxu0 0
    %222 = vmatpush.bf16.msra.mxu0 0
    %223 = vmatpush.bf16.msra.mxu0 %v148
    %224 = vmatpush.bf16.msra.mxu0 %v147
    %225 = vmatmul.bf16.gmra.mxu0 %v215
    %v226 = vpop.f32.mrf.mxu0
    %v227 = vadd.f32 %v138, %v226
    %v228 = vpop.f32.mrf.mxu0
    %229 = vdwg.mxu0
    %v231 = vrot.slane %v227, 6
    %v233 = vadd.f32 %v134, %v231
    %v234 = vxor.u32 %v233, 2147483648
    %v235 = vmul.f32 %v234, 1.442695
    %v236 = vpow.pop %v235
    %v237 = vadd.f32 %v236, 1.0
    %v238 = vrcp.pop %v237
    %v239 = vmul.f32 %v237, %v238
    %v240 = vsub.f32 1.0, %v239
    %v241 = vmul.f32 %v238, %v240
    %v242 = vadd.f32 %v238, %v241
    %vm243 = vweird.f32 %v237
    %vm244 = vweird.f32 %v238
    %vm245 = vmor %vm243, %vm244
    %v246 = vsel %vm245, %v238, %v242
    %v247 = vand.u32 2147483647, %v237
    %vm248 = vcmp.eq.f32.partialorder %v247, 8.507059e+37
    %v249 = vand.u32 %v237, 2147483648
    %v250 = vor.u32 1.1754944e-38, %v249
    %v251 = vsel %vm248, %v250, %v246
    %v252 = vmul.f32 1.0, %v251
    %253 = vrot.lane.b32.xlu0 %v231, 64
    %v254 = vpop.permute.xlu0 %253
    %v256 = vmul.f32 %v252, %v254
    %258 = vrot.lane.b32.xlu0 %v256, 64
    %v259 = vpop.permute.xlu0 %258
    %v261 = vadd.f32 %v134, %v259
    %v262 = vtanh.pop %v261
    %v263 = vsub.f32 1.0, %v252
    %265 = vrot.lane.b32.xlu0 %v262, 96
    %v266 = vpop.permute.xlu0 %265
    %v268 = vmul.f32 %v263, %v266
    %v270 = vrot.slane %v206, 6
    %v272 = vmul.f32 %v252, %v270
    %v273 = vadd.f32 %v268, %v272
    %vm274 = vcmp.ge.f32.partialorder %v273, 0.0
    %v275 = vmul.f32 %v273, 0.01
    %v276 = vsel %vm274, %v273, %v275
    %v277 = vpack.c.bf16 %v273, %v273
    %v279 = vrot.slane %v277, 1
    %280 = vrot.lane.b32.xlu0 %v279, 96
    %v281 = vpop.permute.xlu0 %280
    %v283 = vsel %vm151, %v281, 0
    %285 = vmatpush.bf16.msra.mxu0 0
    %286 = vmatpush.bf16.msra.mxu0 0
    %287 = vmatpush.bf16.msra.mxu0 0
    %288 = vmatpush.bf16.msra.mxu0 0
    %289 = vmatpush.bf16.msra.mxu0 0
    %290 = vmatpush.bf16.msra.mxu0 0
    %291 = vmatpush.bf16.msra.mxu0 %v148
    %292 = vmatpush.bf16.msra.mxu0 %v147
    %293 = vmatmul.bf16.gmra.mxu0 %v283
    %v294 = vpop.f32.mrf.mxu0
    %v295 = vadd.f32 %v138, %v294
    %v296 = vpop.f32.mrf.mxu0
    %297 = vdwg.mxu0
    %v299 = vrot.slane %v295, 4
    %v301 = vadd.f32 %v134, %v299
    %v302 = vxor.u32 %v301, 2147483648
    %v303 = vmul.f32 %v302, 1.442695
    %v304 = vpow.pop %v303
    %v305 = vadd.f32 %v304, 1.0
    %v306 = vrcp.pop %v305
    %v307 = vmul.f32 %v305, %v306
    %v308 = vsub.f32 1.0, %v307
    %v309 = vmul.f32 %v306, %v308
    %v310 = vadd.f32 %v306, %v309
    %vm311 = vweird.f32 %v305
    %vm312 = vweird.f32 %v306
    %vm313 = vmor %vm311, %vm312
    %v314 = vsel %vm313, %v306, %v310
    %v315 = vand.u32 2147483647, %v305
    %vm316 = vcmp.eq.f32.partialorder %v315, 8.507059e+37
    %v317 = vand.u32 %v305, 2147483648
    %v318 = vor.u32 1.1754944e-38, %v317
    %v319 = vsel %vm316, %v318, %v314
    %v320 = vmul.f32 1.0, %v319
    %321 = vrot.lane.b32.xlu0 %v299, 64
    %v322 = vpop.permute.xlu0 %321
    %v324 = vmul.f32 %v320, %v322
    %326 = vrot.lane.b32.xlu0 %v324, 64
    %v327 = vpop.permute.xlu0 %326
    %v329 = vadd.f32 %v134, %v327
    %v330 = vtanh.pop %v329
    %v331 = vsub.f32 1.0, %v320
    %333 = vrot.lane.b32.xlu0 %v330, 96
    %v334 = vpop.permute.xlu0 %333
    %v336 = vmul.f32 %v331, %v334
    %v338 = vrot.slane %v273, 6
    %v340 = vmul.f32 %v320, %v338
    %v341 = vadd.f32 %v336, %v340
    %vm342 = vcmp.ge.f32.partialorder %v341, 0.0
    %v343 = vmul.f32 %v341, 0.01
    %v344 = vsel %vm342, %v341, %v343
    %v345 = vpack.c.bf16 %v341, %v341
    %v347 = vrot.slane %v345, 2
    %348 = vrot.lane.b32.xlu0 %v347, 96
    %v349 = vpop.permute.xlu0 %348
    %v351 = vsel %vm151, %v349, 0
    %353 = vmatpush.bf16.msra.mxu0 0
    %354 = vmatpush.bf16.msra.mxu0 0
    %355 = vmatpush.bf16.msra.mxu0 0
    %356 = vmatpush.bf16.msra.mxu0 0
    %357 = vmatpush.bf16.msra.mxu0 0
    %358 = vmatpush.bf16.msra.mxu0 0
    %359 = vmatpush.bf16.msra.mxu0 %v148
    %360 = vmatpush.bf16.msra.mxu0 %v147
    %361 = vmatmul.bf16.gmra.mxu0 %v351
    %v362 = vpop.f32.mrf.mxu0
    %v363 = vadd.f32 %v138, %v362
    %v364 = vpop.f32.mrf.mxu0
    %365 = vdwg.mxu0
    %v367 = vrot.slane %v363, 2
    %v369 = vadd.f32 %v134, %v367
    %v370 = vxor.u32 %v369, 2147483648
    %v371 = vmul.f32 %v370, 1.442695
    %v372 = vpow.pop %v371
    %v373 = vadd.f32 %v372, 1.0
    %v374 = vrcp.pop %v373
    %v375 = vmul.f32 %v373, %v374
    %v376 = vsub.f32 1.0, %v375
    %v377 = vmul.f32 %v374, %v376
    %v378 = vadd.f32 %v374, %v377
    %vm379 = vweird.f32 %v373
    %vm380 = vweird.f32 %v374
    %vm381 = vmor %vm379, %vm380
    %v382 = vsel %vm381, %v374, %v378
    %v383 = vand.u32 2147483647, %v373
    %vm384 = vcmp.eq.f32.partialorder %v383, 8.507059e+37
    %v385 = vand.u32 %v373, 2147483648
    %v386 = vor.u32 1.1754944e-38, %v385
    %v387 = vsel %vm384, %v386, %v382
    %v388 = vmul.f32 1.0, %v387
    %389 = vrot.lane.b32.xlu0 %v367, 64
    %v390 = vpop.permute.xlu0 %389
    %v392 = vmul.f32 %v388, %v390
    %394 = vrot.lane.b32.xlu0 %v392, 64
    %v395 = vpop.permute.xlu0 %394
    %v397 = vadd.f32 %v134, %v395
    %v398 = vtanh.pop %v397
    %v399 = vsub.f32 1.0, %v388
    %401 = vrot.lane.b32.xlu0 %v398, 96
    %v402 = vpop.permute.xlu0 %401
    %v404 = vmul.f32 %v399, %v402
    %v406 = vrot.slane %v341, 6
    %v408 = vmul.f32 %v388, %v406
    %v409 = vadd.f32 %v404, %v408
    %vm410 = vcmp.ge.f32.partialorder %v409, 0.0
    %v411 = vmul.f32 %v409, 0.01
    %v412 = vsel %vm410, %v409, %v411
    %v413 = vpack.c.bf16 %v409, %v409
    %v415 = vrot.slane %v413, 3
    %416 = vrot.lane.b32.xlu0 %v415, 96
    %v417 = vpop.permute.xlu0 %416
    %v419 = vsel %vm151, %v417, 0
    %421 = vmatpush.bf16.msra.mxu0 0
    %422 = vmatpush.bf16.msra.mxu0 0
    %423 = vmatpush.bf16.msra.mxu0 0
    %424 = vmatpush.bf16.msra.mxu0 0
    %425 = vmatpush.bf16.msra.mxu0 0
    %426 = vmatpush.bf16.msra.mxu0 0
    %427 = vmatpush.bf16.msra.mxu0 %v148
    %428 = vmatpush.bf16.msra.mxu0 %v147
    %429 = vmatmul.bf16.gmra.mxu0 %v419
    %v430 = vpop.f32.mrf.mxu0
    %v431 = vadd.f32 %v138, %v430
    %v432 = vpop.f32.mrf.mxu0
    %433 = vdwg.mxu0
    %v434 = vadd.f32 %v136, %v431
    %v435 = vxor.u32 %v434, 2147483648
    %v436 = vmul.f32 %v435, 1.442695
    %v437 = vpow.pop %v436
    %v438 = vadd.f32 %v437, 1.0
    %v439 = vrcp.pop %v438
    %v440 = vmul.f32 %v438, %v439
    %v441 = vsub.f32 1.0, %v440
    %v442 = vmul.f32 %v439, %v441
    %v443 = vadd.f32 %v439, %v442
    %vm444 = vweird.f32 %v438
    %vm445 = vweird.f32 %v439
    %vm446 = vmor %vm444, %vm445
    %v447 = vsel %vm446, %v439, %v443
    %v448 = vand.u32 2147483647, %v438
    %vm449 = vcmp.eq.f32.partialorder %v448, 8.507059e+37
    %v450 = vand.u32 %v438, 2147483648
    %v451 = vor.u32 1.1754944e-38, %v450
    %v452 = vsel %vm449, %v451, %v447
    %v453 = vmul.f32 1.0, %v452
    %455 = vrot.lane.b32.xlu0 %v431, 64
    %v456 = vpop.permute.xlu0 %455
    %v458 = vmul.f32 %v453, %v456
    %460 = vrot.lane.b32.xlu0 %v458, 64
    %v461 = vpop.permute.xlu0 %460
    %v463 = vadd.f32 %v136, %v461
    %v464 = vtanh.pop %v463
    %v465 = vsub.f32 1.0, %v453
    %467 = vrot.lane.b32.xlu0 %v464, 96
    %v468 = vpop.permute.xlu0 %467
    %v470 = vmul.f32 %v465, %v468
    %v472 = vrot.slane %v409, 6
    %v474 = vmul.f32 %v453, %v472
    %v475 = vadd.f32 %v470, %v474
    %vm476 = vcmp.ge.f32.partialorder %v475, 0.0
    %v477 = vmul.f32 %v475, 0.01
    %v478 = vsel %vm476, %v475, %v477
    %v479 = vpack.c.bf16 %v475, %v475
    %481 = vrot.lane.b32.xlu0 %v479, 96
    %v482 = vpop.permute.xlu0 %481
    %v484 = vsel %vm151, %v482, 0
    %486 = vmatpush.bf16.msra.mxu0 0
    %487 = vmatpush.bf16.msra.mxu0 0
    %488 = vmatpush.bf16.msra.mxu0 0
    %489 = vmatpush.bf16.msra.mxu0 0
    %490 = vmatpush.bf16.msra.mxu0 0
    %491 = vmatpush.bf16.msra.mxu0 0
    %492 = vmatpush.bf16.msra.mxu0 %v148
    %493 = vmatpush.bf16.msra.mxu0 %v147
    %494 = vmatmul.bf16.gmra.mxu0 %v484
    %v495 = vpop.f32.mrf.mxu0
    %v496 = vadd.f32 %v138, %v495
    %v497 = vpop.f32.mrf.mxu0
    %498 = vdwg.mxu0
    %v500 = vrot.slane %v496, 6
    %v502 = vadd.f32 %v136, %v500
    %v503 = vxor.u32 %v502, 2147483648
    %v504 = vmul.f32 %v503, 1.442695
    %v505 = vpow.pop %v504
    %v506 = vadd.f32 %v505, 1.0
    %v507 = vrcp.pop %v506
    %v508 = vmul.f32 %v506, %v507
    %v509 = vsub.f32 1.0, %v508
    %v510 = vmul.f32 %v507, %v509
    %v511 = vadd.f32 %v507, %v510
    %vm512 = vweird.f32 %v506
    %vm513 = vweird.f32 %v507
    %vm514 = vmor %vm512, %vm513
    %v515 = vsel %vm514, %v507, %v511
    %v516 = vand.u32 2147483647, %v506
    %vm517 = vcmp.eq.f32.partialorder %v516, 8.507059e+37
    %v518 = vand.u32 %v506, 2147483648
    %v519 = vor.u32 1.1754944e-38, %v518
    %v520 = vsel %vm517, %v519, %v515
    %v521 = vmul.f32 1.0, %v520
    %522 = vrot.lane.b32.xlu0 %v500, 64
    %v523 = vpop.permute.xlu0 %522
    %v525 = vmul.f32 %v521, %v523
    %527 = vrot.lane.b32.xlu0 %v525, 64
    %v528 = vpop.permute.xlu0 %527
    %v530 = vadd.f32 %v136, %v528
    %v531 = vtanh.pop %v530
    %v532 = vsub.f32 1.0, %v521
    %534 = vrot.lane.b32.xlu0 %v531, 96
    %v535 = vpop.permute.xlu0 %534
    %v537 = vmul.f32 %v532, %v535
    %v539 = vrot.slane %v475, 6
    %v541 = vmul.f32 %v521, %v539
    %v542 = vadd.f32 %v537, %v541
    %vm543 = vcmp.ge.f32.partialorder %v542, 0.0
    %v544 = vmul.f32 %v542, 0.01
    %v545 = vsel %vm543, %v542, %v544
    %v546 = vpack.c.bf16 %v542, %v542
    %v548 = vrot.slane %v546, 1
    %549 = vrot.lane.b32.xlu0 %v548, 96
    %v550 = vpop.permute.xlu0 %549
    %v552 = vsel %vm151, %v550, 0
    %554 = vmatpush.bf16.msra.mxu0 0
    %555 = vmatpush.bf16.msra.mxu0 0
    %556 = vmatpush.bf16.msra.mxu0 0
    %557 = vmatpush.bf16.msra.mxu0 0
    %558 = vmatpush.bf16.msra.mxu0 0
    %559 = vmatpush.bf16.msra.mxu0 0
    %560 = vmatpush.bf16.msra.mxu0 %v148
    %561 = vmatpush.bf16.msra.mxu0 %v147
    %562 = vmatmul.bf16.gmra.mxu0 %v552
    %v563 = vpop.f32.mrf.mxu0
    %v564 = vadd.f32 %v138, %v563
    %v565 = vpop.f32.mrf.mxu0
    %566 = vdwg.mxu0
    %v568 = vrot.slane %v564, 4
    %v570 = vadd.f32 %v136, %v568
    %v571 = vxor.u32 %v570, 2147483648
    %v572 = vmul.f32 %v571, 1.442695
    %v573 = vpow.pop %v572
    %v574 = vadd.f32 %v573, 1.0
    %v575 = vrcp.pop %v574
    %v576 = vmul.f32 %v574, %v575
    %v577 = vsub.f32 1.0, %v576
    %v578 = vmul.f32 %v575, %v577
    %v579 = vadd.f32 %v575, %v578
    %vm580 = vweird.f32 %v574
    %vm581 = vweird.f32 %v575
    %vm582 = vmor %vm580, %vm581
    %v583 = vsel %vm582, %v575, %v579
    %v584 = vand.u32 2147483647, %v574
    %vm585 = vcmp.eq.f32.partialorder %v584, 8.507059e+37
    %v586 = vand.u32 %v574, 2147483648
    %v587 = vor.u32 1.1754944e-38, %v586
    %v588 = vsel %vm585, %v587, %v583
    %v589 = vmul.f32 1.0, %v588
    %590 = vrot.lane.b32.xlu0 %v568, 64
    %v591 = vpop.permute.xlu0 %590
    %v593 = vmul.f32 %v589, %v591
    %595 = vrot.lane.b32.xlu0 %v593, 64
    %v596 = vpop.permute.xlu0 %595
    %v598 = vadd.f32 %v136, %v596
    %v599 = vtanh.pop %v598
    %v600 = vsub.f32 1.0, %v589
    %602 = vrot.lane.b32.xlu0 %v599, 96
    %v603 = vpop.permute.xlu0 %602
    %v605 = vmul.f32 %v600, %v603
    %v607 = vrot.slane %v542, 6
    %v609 = vmul.f32 %v589, %v607
    %v610 = vadd.f32 %v605, %v609
    %vm611 = vcmp.ge.f32.partialorder %v610, 0.0
    %v612 = vmul.f32 %v610, 0.01
    %v613 = vsel %vm611, %v610, %v612
    %v614 = vpack.c.bf16 %v610, %v610
    %v616 = vrot.slane %v614, 2
    %617 = vrot.lane.b32.xlu0 %v616, 96
    %v618 = vpop.permute.xlu0 %617
    %v620 = vsel %vm151, %v618, 0
    %622 = vmatpush.bf16.msra.mxu0 0
    %623 = vmatpush.bf16.msra.mxu0 0
    %624 = vmatpush.bf16.msra.mxu0 0
    %625 = vmatpush.bf16.msra.mxu0 0
    %626 = vmatpush.bf16.msra.mxu0 0
    %627 = vmatpush.bf16.msra.mxu0 0
    %628 = vmatpush.bf16.msra.mxu0 %v148
    %629 = vmatpush.bf16.msra.mxu0 %v147
    %630 = vmatmul.bf16.gmra.mxu0 %v620
    %v631 = vpop.f32.mrf.mxu0
    %v632 = vadd.f32 %v138, %v631
    %v633 = vpop.f32.mrf.mxu0
    %634 = vdwg.mxu0
    %v636 = vrot.slane %v632, 2
    %v638 = vadd.f32 %v136, %v636
    %v639 = vxor.u32 %v638, 2147483648
    %v640 = vmul.f32 %v639, 1.442695
    %v641 = vpow.pop %v640
    %v642 = vadd.f32 %v641, 1.0
    %v643 = vrcp.pop %v642
    %v644 = vmul.f32 %v642, %v643
    %v645 = vsub.f32 1.0, %v644
    %v646 = vmul.f32 %v643, %v645
    %v647 = vadd.f32 %v643, %v646
    %vm648 = vweird.f32 %v642
    %vm649 = vweird.f32 %v643
    %vm650 = vmor %vm648, %vm649
    %v651 = vsel %vm650, %v643, %v647
    %v652 = vand.u32 2147483647, %v642
    %vm653 = vcmp.eq.f32.partialorder %v652, 8.507059e+37
    %v654 = vand.u32 %v642, 2147483648
    %v655 = vor.u32 1.1754944e-38, %v654
    %v656 = vsel %vm653, %v655, %v651
    %v657 = vmul.f32 1.0, %v656
    %658 = vrot.lane.b32.xlu0 %v636, 64
    %v659 = vpop.permute.xlu0 %658
    %v661 = vmul.f32 %v657, %v659
    %663 = vrot.lane.b32.xlu0 %v661, 64
    %v664 = vpop.permute.xlu0 %663
    %v666 = vadd.f32 %v136, %v664
    %v667 = vtanh.pop %v666
    %v668 = vsub.f32 1.0, %v657
    %670 = vrot.lane.b32.xlu0 %v667, 96
    %v671 = vpop.permute.xlu0 %670
    %v673 = vmul.f32 %v668, %v671
    %v675 = vrot.slane %v610, 6
    %v677 = vmul.f32 %v657, %v675
    %v678 = vadd.f32 %v673, %v677
    %vm679 = vcmp.ge.f32.partialorder %v678, 0.0
    %v680 = vmul.f32 %v678, 0.01
    %v681 = vsel %vm679, %v678, %v680
    %683 = vrot.lane.b32.xlu0 %v209, 96
    %v684 = vpop.permute.xlu0 %683
    %v687 = vrot.slane %v276, 2
    %v690 = vrot.slane %v344, 4
    %691 = vrot.lane.b32.xlu0 %v690, 32
    %v692 = vpop.permute.xlu0 %691
    %v695 = vrot.slane %v412, 6
    %696 = vrot.lane.b32.xlu0 %v695, 64
    %v697 = vpop.permute.xlu0 %696
    %700 = vrot.lane.b32.xlu0 %v478, 96
    %v701 = vpop.permute.xlu0 %700
    %v704 = vrot.slane %v545, 2
    %v707 = vrot.slane %v613, 4
    %708 = vrot.lane.b32.xlu0 %v707, 32
    %v709 = vpop.permute.xlu0 %708
    %v712 = vrot.slane %v681, 6
    %713 = vrot.lane.b32.xlu0 %v712, 64
    %v714 = vpop.permute.xlu0 %713
    %v716 = vsel %vm151, %v684, %v687
    %vm717 = vcmask 523264
    %v718 = vsel %vm717, %v716, %v692
    %vm719 = vcmask 785408
    %v720 = vsel %vm719, %v718, %v697
    %v721 = vsel %vm151, %v701, %v704
    %v722 = vsel %vm717, %v721, %v709
    %v723 = vsel %vm719, %v722, %v714
    %v726 = vrot.slane %v723, 6
    %vm727 = vcmask 1041408
    %v728 = vsel %vm727, %v720, %v726
    %730 = vst [vmem:[#allocation5] sm:$0xf] %v728
    %v731 = vpack.c.bf16 %v720, %v720
    %v732 = vpack.c.bf16 %v723, %v723
    %v733 = vperm.slane %v77, 0
    %v766 = vunpack.c.l.b16 %v42
    %v767 = vunpack.c.l.b16 %v43
    %v768 = vunpack.c.l.b16 %v44
    %v769 = vunpack.c.l.b16 %v45
    %v770 = vunpack.c.l.b16 %v46
    %v771 = vunpack.c.l.b16 %v47
    %v772 = vunpack.c.l.b16 %v48
    %v773 = vunpack.c.l.b16 %v49
    %v774 = vunpack.c.l.b16 %v50
    %v775 = vunpack.c.l.b16 %v51
    %v776 = vunpack.c.l.b16 %v52
    %v777 = vunpack.c.l.b16 %v53
    %v778 = vunpack.c.l.b16 %v54
    %v779 = vunpack.c.l.b16 %v55
    %v780 = vunpack.c.l.b16 %v56
    %v781 = vunpack.c.l.b16 %v57
    %v782 = vunpack.c.l.b16 %v58
    %v783 = vunpack.c.l.b16 %v59
    %v784 = vunpack.c.l.b16 %v60
    %v785 = vunpack.c.l.b16 %v61
    %v786 = vunpack.c.l.b16 %v62
    %v787 = vunpack.c.l.b16 %v63
    %v788 = vunpack.c.l.b16 %v64
    %v789 = vunpack.c.l.b16 %v65
    %v790 = vunpack.c.l.b16 %v66
    %v791 = vunpack.c.l.b16 %v67
    %v792 = vunpack.c.l.b16 %v68
    %v793 = vunpack.c.l.b16 %v69
    %v794 = vunpack.c.l.b16 %v70
    %v795 = vunpack.c.l.b16 %v71
    %v796 = vunpack.c.l.b16 %v72
    %v797 = vunpack.c.l.b16 %v73
    %v798 = vpack.c.b16 %v767, %v766
    %v799 = vpack.c.b16 %v769, %v768
    %v800 = vpack.c.b16 %v771, %v770
    %v801 = vpack.c.b16 %v773, %v772
    %v802 = vpack.c.b16 %v775, %v774
    %v803 = vpack.c.b16 %v777, %v776
    %v804 = vpack.c.b16 %v779, %v778
    %v805 = vpack.c.b16 %v781, %v780
    %v806 = vpack.c.b16 %v783, %v782
    %v807 = vpack.c.b16 %v785, %v784
    %v808 = vpack.c.b16 %v787, %v786
    %v809 = vpack.c.b16 %v789, %v788
    %v810 = vpack.c.b16 %v791, %v790
    %v811 = vpack.c.b16 %v793, %v792
    %v812 = vpack.c.b16 %v795, %v794
    %v813 = vpack.c.b16 %v797, %v796
    %830 = vmatpush.bf16.msra.mxu0 %v805
    %831 = vmatpush.bf16.msra.mxu0 %v804
    %832 = vmatpush.bf16.msra.mxu0 %v803
    %833 = vmatpush.bf16.msra.mxu0 %v802
    %834 = vmatpush.bf16.msra.mxu0 %v801
    %835 = vmatpush.bf16.msra.mxu0 %v800
    %836 = vmatpush.bf16.msra.mxu0 %v799
    %837 = vmatpush.bf16.msra.mxu0 %v798
    %838 = vmatmul.bf16.gmra.mxu0 %v731
    %v839 = vpop.f32.mrf.mxu0
    %v840 = vadd.f32 %v733, %v839
    %v841 = vpop.f32.mrf.mxu0
    %842 = vdwg.mxu0
    %843 = vmatpush.bf16.msra.mxu0 %v813
    %844 = vmatpush.bf16.msra.mxu0 %v812
    %845 = vmatpush.bf16.msra.mxu0 %v811
    %846 = vmatpush.bf16.msra.mxu0 %v810
    %847 = vmatpush.bf16.msra.mxu0 %v809
    %848 = vmatpush.bf16.msra.mxu0 %v808
    %849 = vmatpush.bf16.msra.mxu0 %v807
    %850 = vmatpush.bf16.msra.mxu0 %v806
    %851 = vmatmul.bf16.gmra.mxu0 %v732
    %v852 = vpop.f32.mrf.mxu0
    %v853 = vadd.f32 %v840, %v852
    %v854 = vpop.f32.mrf.mxu0
    %855 = vdwg.mxu0
    %v856 = vxor.u32 %v853, 2147483648
    %v857 = vmul.f32 %v856, 1.442695
    %v858 = vpow.pop %v857
    %v859 = vadd.f32 %v858, 1.0
    %v860 = vrcp.pop %v859
    %v861 = vmul.f32 %v859, %v860
    %v862 = vsub.f32 1.0, %v861
    %v863 = vmul.f32 %v860, %v862
    %v864 = vadd.f32 %v860, %v863
    %vm865 = vweird.f32 %v859
    %vm866 = vweird.f32 %v860
    %vm867 = vmor %vm865, %vm866
    %v868 = vsel %vm867, %v860, %v864
    %v869 = vand.u32 2147483647, %v859
    %vm870 = vcmp.eq.f32.partialorder %v869, 8.507059e+37
    %v871 = vand.u32 %v859, 2147483648
    %v872 = vor.u32 1.1754944e-38, %v871
    %v873 = vsel %vm870, %v872, %v868
    %v874 = vmul.f32 1.0, %v873
    %vm875 = vcmask 91136
    %876 = vst.msk [vmem:[%s5] sm:$0x3] %vm875, %v874
    // Predicated region
    $region18: #{rnn_forward.1} parent=1 // pred_check
      _
    $region19: #{rnn_forward.1} parent=1 // pred_check_branch
      %878 = sbr.rel (0) target = $region21
    $region20: #{rnn_forward.1} parent=1 // pred_region
      _
    $region21: #{rnn_forward.1} parent=1 // pred_fallthru
      _
    // Predicated region
    $region22: #{rnn_forward.1} parent=1 // pred_check
      _
    $region23: #{rnn_forward.1} parent=1 // pred_check_branch
      %880 = sbr.rel (0) target = $region25
    $region24: #{rnn_forward.1} parent=1 // pred_region
      %882 = vsyncadd [#allocation4], 0
      %s884 = sshll.u32 [#allocation5], 4
      %s885 = int_to_ptr.vmem [resolvable:$true] %s884
      %s886 = sshll.u32 %s4, 4
      %s887 = int_to_ptr.hbm [resolvable:$true] %s886
      %889 = dma.vmem_to_hbm [thread:$0]  %s885, 64, %s887, [#allocation4]
    $region25: #{rnn_forward.1} parent=1 // pred_fallthru
      _
    // Predicated region
    $region26: #{rnn_forward.1} parent=1 // pred_check
      _
    $region27: #{rnn_forward.1} parent=1 // pred_check_branch
      %891 = sbr.rel (0) target = $region29
    $region28: #{rnn_forward.1} parent=1 // pred_region
      _
    $region29: #{rnn_forward.1} parent=1 // pred_fallthru
      _
    // Predicated region
    $region30: #{rnn_forward.1} parent=1 // pred_check
      _
    $region31: #{rnn_forward.1} parent=1 // pred_check_branch
      %893 = sbr.rel (0) target = $region33
    $region32: #{rnn_forward.1} parent=1 // pred_region
      _
    $region33: #{rnn_forward.1} parent=1 // pred_fallthru
      _
    // Predicated region
    $region34: #{rnn_forward.1} parent=1 // pred_check
      _
    $region35: #{rnn_forward.1} parent=1 // pred_check_branch
      %895 = sbr.rel (0) target = $region37
    $region36: #{rnn_forward.1} parent=1 // pred_region
      %897 = dma.done [#allocation4], 64
    $region37: #{rnn_forward.1} parent=1 // pred_fallthru
      _
    // Predicated region
    $region38: #{rnn_forward.1} parent=1 // pred_check
      _
    $region39: #{rnn_forward.1} parent=1 // pred_check_branch
      %899 = sbr.rel (0) target = $region41
    $region40: #{rnn_forward.1} parent=1 // pred_region
      _
    $region41: #{rnn_forward.1} parent=1 // pred_fallthru
      _
    %900 = vsyncpa [#allocation3], 1
    %901 = vsyncpa [#allocation4], 1

</llo_original>
